<compile_context>
chip_gen: v7x
topology: tpu7x:2x2x1
jax: 0.10.0
libtpu: 0.0.40
codegen_flags: <defaults>
</compile_context>

<pallas_src>
import functools

import jax
import jax.numpy as jnp
from jax.experimental import pallas as pl
from jax.experimental.pallas import tpu as pltpu


def _softplus(z):
    # Matches torch.nn.Softplus (beta=1, threshold=20): z for z > 20,
    # log1p(exp(z)) otherwise (numerically stable).
    return jnp.where(z > 20.0, z, jnp.log1p(jnp.exp(jnp.minimum(z, 20.0))))


def _hypanet_kernel(x_ref, w1_ref, b1_ref, w2_ref, b2_ref, o_ref, *,
                    chunk_m, act_dtype):
    """One (batch, spatial-tile) grid step.

    x_ref : (1, C_in, TILE_M)        input pixels (norm folded into W1/b1)
    w1_ref: (NC, C_in)   f32         first 1x1 conv weight (pre-scaled by 1/0.0566)
    b1_ref: (NC, 1)      f32
    w2_ref: (C_out, NC)  act_dtype   second 1x1 conv weight
    b2_ref: (C_out, 1)   f32
    o_ref : (1, C_out, TILE_M)
    """
    tile_m = x_ref.shape[-1]
    n_chunks = tile_m // chunk_m            # host guarantees divisibility

    w1 = w1_ref[...]
    b1 = b1_ref[...]
    w2 = w2_ref[...]
    b2 = b2_ref[...]

    # Static (fully unrolled) chunk loop: purely static lane slices (no dynamic
    # minor-dim indexing to lower), and each (NC, chunk_m) hidden activation's
    # live range is bounded, so it stays in vregs instead of round-tripping
    # through VMEM (a whole (NC, TILE_M) f32 slab cannot fit in 64 vregs).
    for c in range(n_chunks):
        sl = slice(c * chunk_m, (c + 1) * chunk_m)
        x = x_ref[0, :, sl].astype(jnp.float32)                 # (C_in, chunk)

        if w1.shape[1] == 1:
            # K=1 contraction: broadcast multiply-add on the VPU; MXU stays free.
            h = w1 * x + b1                                     # (NC, chunk)
        else:
            h = jnp.dot(w1, x, preferred_element_type=jnp.float32) + b1

        h = h.astype(act_dtype)
        # sigmoid(z) == 0.5 * tanh(z/2) + 0.5 : one EUP op per element
        # (exp + reciprocal form costs two); mul/add absorbed by VALU slack.
        h = 0.5 * jnp.tanh(0.5 * h) + 0.5                       # (NC, chunk)

        y = jnp.dot(w2, h, preferred_element_type=jnp.float32) + b2
        y = _softplus(y) + 1e-6                                 # (C_out, chunk), f32

        o_ref[0, :, sl] = y.astype(o_ref.dtype)


def hypanet_forward(x_nchw, w1, b1, w2, b2, *, tile_m=8192, chunk_m=512,
                    activation_dtype=jnp.float32, out_dtype=jnp.float32):
    """HyPaNet forward.

    x_nchw: (B, C_in, H, W).  w1: (NC, C_in), b1: (NC,), w2: (C_out, NC), b2: (C_out,).
    activation_dtype=jnp.bfloat16 enables the faster v6e/v7x activation path
    (~1e-2 relative error); the default f32 matches the reference to 1e-5.
    """
    B, C_in, H, W = x_nchw.shape
    NC = w1.shape[0]
    C_out = w2.shape[0]
    HW = H * W

    # NCHW -> (B, C_in, H*W): pure reshape, no data movement.
    x_flat = x_nchw.reshape(B, C_in, HW)

    # Fold the input normalization (x - 0.098)/0.0566 into the first layer:
    #   w1' = w1 / 0.0566 ,  b1' = b1 - (0.098 / 0.0566) * sum_c w1
    act_dtype = jnp.dtype(activation_dtype)
    w1_f = (w1 / 0.0566).astype(jnp.float32)                                   # (NC, C_in)
    b1_f = (b1 - (0.098 / 0.0566) * jnp.sum(w1, axis=1)).reshape(NC, 1)
    b1_f = b1_f.astype(jnp.float32)
    w2_f = w2.astype(act_dtype)                                                # (C_out, NC)
    b2_f = b2.reshape(C_out, 1).astype(jnp.float32)

    # --- spatial tiling: big lane-dense tile, processed in chunk_m sub-chunks ---
    hw_pad = pl.cdiv(HW, 128) * 128               # minimum lane granularity
    chunk_m = max(128, (int(chunk_m) // 128) * 128)
    tile_m = max(128, min(int(tile_m), hw_pad))
    chunk_m = min(chunk_m, tile_m)
    tile_m = (tile_m // chunk_m) * chunk_m        # kernel unrolls tile_m // chunk_m chunks
    n_tiles = pl.cdiv(HW, tile_m)                 # ragged tail -> Pallas pads + masks writes

    # v7x has 2 TensorCores sharing the "parallel" grid axes: avoid handing the
    # whole problem to a single grid point when B is small (no-op on v5e/v6e).
    if B * n_tiles < 2 and tile_m > chunk_m:
        tile_m = max(chunk_m, pl.cdiv(tile_m, 2 * chunk_m) * chunk_m)
        n_tiles = pl.cdiv(HW, tile_m)

    kernel = functools.partial(_hypanet_kernel, chunk_m=chunk_m, act_dtype=act_dtype)

    out_flat = pl.pallas_call(
        kernel,
        out_shape=jax.ShapeDtypeStruct((B, C_out, HW), jnp.dtype(out_dtype)),
        grid_spec=pltpu.PrefetchScalarGridSpec(
            num_scalar_prefetch=0,
            grid=(B, n_tiles),
            in_specs=[
                pl.BlockSpec((1, C_in, tile_m), lambda b, j: (b, 0, j)),
                pl.BlockSpec((NC, C_in), lambda b, j: (0, 0)),
                pl.BlockSpec((NC, 1), lambda b, j: (0, 0)),
                pl.BlockSpec((C_out, NC), lambda b, j: (0, 0)),
                pl.BlockSpec((C_out, 1), lambda b, j: (0, 0)),
            ],
            out_specs=pl.BlockSpec((1, C_out, tile_m), lambda b, j: (b, 0, j)),
        ),
        compiler_params=pltpu.CompilerParams(
            dimension_semantics=("parallel", "parallel"),
        ),
    )(x_flat, w1_f, b1_f, w2_f, b2_f)

    # (B, C_out, H*W) is already NCHW-contiguous: reshape only.
    return out_flat.reshape(B, C_out, H, W)


def _reference(x_nchw, w1, b1, w2, b2):
    x = (x_nchw - 0.098) / 0.0566
    # 1x1 conv == einsum over channels
    h = jnp.einsum("bchw,oc->bohw", x, w1) + b1[None, :, None, None]
    h = jax.nn.sigmoid(h)
    y = jnp.einsum("bchw,oc->bohw", h, w2) + b2[None, :, None, None]
    y = jnp.where(y > 20.0, y, jnp.log1p(jnp.exp(jnp.minimum(y, 20.0)))) + 1e-6
    return y


if __name__ == "__main__":
    # Small shapes consistent with HyPaNet(in_nc=1, nc=64, out_nc=8)
    B, C_in, H, W = 2, 1, 16, 16
    NC, C_out = 64, 8

    key = jax.random.PRNGKey(0)
    k_x, k_w1, k_b1, k_w2, k_b2 = jax.random.split(key, 5)

    x = jax.random.normal(k_x, (B, C_in, H, W), dtype=jnp.float32) * 0.05 + 0.1
    w1 = jax.random.normal(k_w1, (NC, C_in), dtype=jnp.float32) * 0.1
    b1 = jax.random.normal(k_b1, (NC,), dtype=jnp.float32) * 0.1
    w2 = jax.random.normal(k_w2, (C_out, NC), dtype=jnp.float32) * 0.1
    b2 = jax.random.normal(k_b2, (C_out,), dtype=jnp.float32) * 0.1

    out = hypanet_forward(x, w1, b1, w2, b2)
    out = jax.block_until_ready(out)

    ref = _reference(x, w1, b1, w2, b2)
    assert out.shape == (B, C_out, H, W), out.shape
    assert jnp.allclose(out, ref, atol=1e-5, rtol=1e-5), float(jnp.max(jnp.abs(out - ref)))

    print("KERNEL_OK")
</pallas_src>

<mosaic_0001>
module attributes {stable_mosaic.version = 11 : i64} {
  func.func @_hypanet_kernel(%arg0: i32, %arg1: i32, %arg2: memref<1x1x256xf32, #tpu.memory_space<vmem>>, %arg3: memref<64x1xf32, #tpu.memory_space<vmem>>, %arg4: memref<64x1xf32, #tpu.memory_space<vmem>>, %arg5: memref<8x64xf32, #tpu.memory_space<vmem>>, %arg6: memref<8x1xf32, #tpu.memory_space<vmem>>, %arg7: memref<1x8x256xf32, #tpu.memory_space<vmem>>) attributes {dimension_semantics = [#tpu.dimension_semantics<parallel>, #tpu.dimension_semantics<parallel>], iteration_bounds = array<i64: 2, 1>, scalar_prefetch = 0 : i64, scratch_operands = 0 : i64, tpu.core_type = #tpu.core_type<tc>, window_params = [{transform_indices = @transform_0, window_bounds = array<i64: 1, 1, 256>}, {pipeline_mode = #tpu.pipeline_mode<synchronous>, transform_indices = @transform_1, window_bounds = array<i64: 64, 1>}, {pipeline_mode = #tpu.pipeline_mode<synchronous>, transform_indices = @transform_2, window_bounds = array<i64: 64, 1>}, {pipeline_mode = #tpu.pipeline_mode<synchronous>, transform_indices = @transform_3, window_bounds = array<i64: 8, 64>}, {pipeline_mode = #tpu.pipeline_mode<synchronous>, transform_indices = @transform_4, window_bounds = array<i64: 8, 1>}, {transform_indices = @transform_5, window_bounds = array<i64: 1, 8, 256>}]} {
    %c0 = arith.constant 0 : index
    %c0_0 = arith.constant 0 : index
    %0 = vector.load %arg3[%c0, %c0_0] : memref<64x1xf32, #tpu.memory_space<vmem>>, vector<64x1xf32>
    %c0_1 = arith.constant 0 : index
    %c0_2 = arith.constant 0 : index
    %1 = vector.load %arg4[%c0_1, %c0_2] : memref<64x1xf32, #tpu.memory_space<vmem>>, vector<64x1xf32>
    %c0_3 = arith.constant 0 : index
    %c0_4 = arith.constant 0 : index
    %2 = vector.load %arg5[%c0_3, %c0_4] : memref<8x64xf32, #tpu.memory_space<vmem>>, vector<8x64xf32>
    %c0_5 = arith.constant 0 : index
    %c0_6 = arith.constant 0 : index
    %3 = vector.load %arg6[%c0_5, %c0_6] : memref<8x1xf32, #tpu.memory_space<vmem>>, vector<8x1xf32>
    %c0_7 = arith.constant 0 : index
    %c0_8 = arith.constant 0 : index
    %c0_9 = arith.constant 0 : index
    %4 = vector.load %arg2[%c0_7, %c0_8, %c0_9] : memref<1x1x256xf32, #tpu.memory_space<vmem>>, vector<1x1x256xf32>
    %5 = vector.shape_cast %4 : vector<1x1x256xf32> to vector<1x256xf32>
    %6 = vector.broadcast %0 : vector<64x1xf32> to vector<64x256xf32>
    %7 = vector.broadcast %5 : vector<1x256xf32> to vector<64x256xf32>
    %8 = arith.mulf %6, %7 : vector<64x256xf32>
    %9 = vector.broadcast %1 : vector<64x1xf32> to vector<64x256xf32>
    %10 = arith.addf %8, %9 : vector<64x256xf32>
    %cst = arith.constant 5.000000e-01 : f32
    %11 = vector.broadcast %cst : f32 to vector<64x256xf32>
    %12 = arith.mulf %11, %10 : vector<64x256xf32>
    %13 = math.tanh %12 : vector<64x256xf32>
    %cst_10 = arith.constant 5.000000e-01 : f32
    %14 = vector.broadcast %cst_10 : f32 to vector<64x256xf32>
    %15 = arith.mulf %14, %13 : vector<64x256xf32>
    %cst_11 = arith.constant 5.000000e-01 : f32
    %16 = vector.broadcast %cst_11 : f32 to vector<64x256xf32>
    %17 = arith.addf %15, %16 : vector<64x256xf32>
    %cst_12 = arith.constant dense<0.000000e+00> : vector<8x256xf32>
    %18 = tpu.matmul %2, %17, %cst_12 {dimension_numbers = #tpu.dot_dimension_numbers<[1], [0], [0], [1], [0, 0, 1, 1], [], []>} : vector<8x64xf32>, vector<64x256xf32>, vector<8x256xf32> -> vector<8x256xf32>
    %19 = vector.broadcast %3 : vector<8x1xf32> to vector<8x256xf32>
    %20 = arith.addf %18, %19 : vector<8x256xf32>
    %cst_13 = arith.constant 2.000000e+01 : f32
    %21 = vector.broadcast %cst_13 : f32 to vector<8x256xf32>
    %22 = arith.cmpf ogt, %20, %21 : vector<8x256xf32>
    %cst_14 = arith.constant 2.000000e+01 : f32
    %23 = vector.broadcast %cst_14 : f32 to vector<8x256xf32>
    %24 = arith.minimumf %20, %23 : vector<8x256xf32>
    %25 = math.exp %24 : vector<8x256xf32>
    %26 = math.log1p %25 : vector<8x256xf32>
    %27 = arith.select %22, %20, %26 : vector<8x256xi1>, vector<8x256xf32>
    %cst_15 = arith.constant 9.99999997E-7 : f32
    %28 = vector.broadcast %cst_15 : f32 to vector<8x256xf32>
    %29 = arith.addf %27, %28 : vector<8x256xf32>
    %c0_16 = arith.constant 0 : index
    %c0_17 = arith.constant 0 : index
    %c0_18 = arith.constant 0 : index
    %30 = vector.load %arg7[%c0_16, %c0_17, %c0_18] : memref<1x8x256xf32, #tpu.memory_space<vmem>>, vector<1x8x256xf32>
    %31 = vector.shape_cast %30 : vector<1x8x256xf32> to vector<8x256xf32>
    %32 = vector.shape_cast %29 : vector<8x256xf32> to vector<1x8x256xf32>
    tpu.vector_store %arg7[%c0_16, %c0_17, %c0_18], %32 {strides = array<i32>} : memref<1x8x256xf32, #tpu.memory_space<vmem>>, vector<1x8x256xf32>,
    return
  }
  func.func @transform_0(%arg0: i32, %arg1: i32) -> (i32, i32, i32) {
    %c0_i32 = arith.constant 0 : i32
    %c0_i32_0 = arith.constant 0 : i32
    return %arg0, %c0_i32, %arg1 : i32, i32, i32
  }
  func.func @transform_1(%arg0: i32, %arg1: i32) -> (i32, i32) {
    %c0_i32 = arith.constant 0 : i32
    %c0_i32_0 = arith.constant 0 : i32
    %c0_i32_1 = arith.constant 0 : i32
    return %c0_i32, %c0_i32_0 : i32, i32
  }
  func.func @transform_2(%arg0: i32, %arg1: i32) -> (i32, i32) {
    %c0_i32 = arith.constant 0 : i32
    %c0_i32_0 = arith.constant 0 : i32
    %c0_i32_1 = arith.constant 0 : i32
    return %c0_i32, %c0_i32_0 : i32, i32
  }
  func.func @transform_3(%arg0: i32, %arg1: i32) -> (i32, i32) {
    %c0_i32 = arith.constant 0 : i32
    %c0_i32_0 = arith.constant 0 : i32
    %c0_i32_1 = arith.constant 0 : i32
    return %c0_i32, %c0_i32_0 : i32, i32
  }
  func.func @transform_4(%arg0: i32, %arg1: i32) -> (i32, i32) {
    %c0_i32 = arith.constant 0 : i32
    %c0_i32_0 = arith.constant 0 : i32
    %c0_i32_1 = arith.constant 0 : i32
    return %c0_i32, %c0_i32_0 : i32, i32
  }
  func.func @transform_5(%arg0: i32, %arg1: i32) -> (i32, i32, i32) {
    %c0_i32 = arith.constant 0 : i32
    %c0_i32_0 = arith.constant 0 : i32
    return %arg0, %c0_i32, %arg1 : i32, i32, i32
  }
}

</mosaic_0001>

<llo_original>
// kernel: tpu_custom_call.1
$region0: #{tpu_custom_call.1}
  #allocation0 [shape = 'u32[]', space=smem, size = 0x4, offset = 0x4, fixed_abs, tag = 'smem constant byte address 0x4 - core index']
  #allocation1 [shape = 'u32[144,128]{1,0:T(1,128)}', space=vmem, size = 0x12000, scoped, tag = 'internal scratch']
  %s0 = inlined_call_operand.vmem [shape: f32[2,1,256], index: 0, kind: input, shape index: {}]
  %s1 = inlined_call_operand.vmem [shape: f32[64,1], index: 1, kind: input, shape index: {}]
  %s2 = inlined_call_operand.vmem [shape: f32[64,1], index: 2, kind: input, shape index: {}]
  %s3 = inlined_call_operand.vmem [shape: f32[8,64], index: 3, kind: input, shape index: {}]
  %s4 = inlined_call_operand.vmem [shape: f32[8,1], index: 4, kind: input, shape index: {}]
  %s5 = inlined_call_operand.hbm [shape: f32[2,8,256], index: 5, kind: output, shape index: {}]
  %s6 = sld [smem:[#allocation0]]
  $region53: #{tpu_custom_call.1} parent=0
    _
  %s8 = ssub.s32 1, %s6
  %s9 = scalar_select 0, %s8, %s6
  $region1: #{tpu_custom_call.1} parent=0
    #allocation2 [shape = 'u8[16384]{0}', space=vmem, size = 0x4000, scoped, tag = 'output window, operand 0']
    #allocation3 [shape = 's32[2]{0}', space=sflag, size = 0x8, scoped, tag = 'scoped memory for tpu_custom_call.1']
    %10 = vsyncpa [#allocation3], 0
    %s11 = scalar_lea.sflag [#allocation3], 1
    %12 = vsyncpa %s11, 0
    loop: start=0, step=1, limit=4
    $region2: #{tpu_custom_call.1} parent=1 // loop_pre_header
      _
    $region3: #{tpu_custom_call.1} parent=1 // loop_header
      %s14 = sphi 0, %s18
      %p15 = scmp.ge.s32.totalorder %s14, 4
      %s21 = sphi 0, %s33
      %s22 = sphi 0, %s29
      %s23 = sphi 0, %s21
      %s24 = sphi 0, %s22
      %s25 = sphi 0, %s23
      %s26 = sphi 0, %s24
      %s38 = sphi 0, %s40
      %s41 = sphi 0, %s38
      %s42 = sphi 0, %s41
      %s58 = sphi 0, %s42
      %s62 = sphi 0, %s62
      %s64 = sphi 0, %s62
      %s65 = sphi 0, %s64
      %s79 = sphi 0, %s65
      %s83 = sphi 0, %s83
      %s85 = sphi 0, %s83
      %s86 = sphi 0, %s85
      %s100 = sphi 0, %s86
      %s104 = sphi 0, %s104
      %s106 = sphi 0, %s104
      %s107 = sphi 0, %s106
      %s121 = sphi 0, %s107
      %s125 = sphi 0, %s125
      %s127 = sphi 0, %s125
      %s128 = sphi 0, %s127
      %s142 = sphi 0, %s128
      %s150 = sphi 0, %s152
      %s153 = sphi 0, %s150
      %s154 = sphi 0, %s153
      %s170 = sphi 0, %s154
    $region4: #{tpu_custom_call.1} parent=1 // loop_header_branch
      %17 = sbr.rel (%p15) target = $region8
    $region5: #{tpu_custom_call.1} parent=1 // loop_body
      %s19 = ssub.s32 %s14, 1
      %s20 = ssub.s32 %s14, 2
      %s27 = sadd.s32 1, %s22
      %p28 = scmp.ge.s32.totalorder %s27, 1
      %s29 = scalar_select %p28, 0, %s27
      %s30 = sadd.s32 1, %s21
      %s31 = scalar_select %p28, %s30, %s21
      %p32 = scmp.ge.s32.totalorder %s31, 2
      %s33 = scalar_select %p32, 0, %s31
      %s34 = ssub.s32 %s21, %s33
      %s35 = ssub.s32 %s22, %s29
      %s36 = sor.u32 %s34, %s35
      %p37 = scmp.eq.s32.totalorder %s36, 0
      %s39 = sadd.s32 %s38, 1
      %s40 = scalar_select %p37, %s38, %s39
      %p43 = pneg %p37
      %p44 = scmp.eq.s32.totalorder %s14, 1
      %p45 = por %p43, %p44
      %p46 = scmp.ne.s32.totalorder %s38, %s41
      %p47 = scmp.eq.s32.totalorder %s14, 0
      %p48 = por %p46, %p47
      %p49 = scmp.ne.s32.totalorder %s38, %s41
      %p50 = scmp.eq.s32.totalorder %s19, 1
      %p51 = por %p49, %p50
      %p52 = scmp.ne.s32.totalorder %s41, %s42
      %p53 = scmp.eq.s32.totalorder %s19, 0
      %p54 = por %p52, %p53
      %p55 = scmp.ne.s32.totalorder %s41, %s42
      %p56 = scmp.eq.s32.totalorder %s20, 1
      %p57 = por %p55, %p56
      %p59 = scmp.ne.s32.totalorder %s42, %s58
      %p60 = scmp.eq.s32.totalorder %s20, 0
      %p61 = por %p59, %p60
      %s63 = sadd.s32 %s62, 1
      %p66 = scmp.eq.s32.totalorder %s14, 1
      %p67 = scmp.ne.s32.totalorder %s62, %s64
      %p68 = scmp.eq.s32.totalorder %s14, 0
      %p69 = por %p67, %p68
      %p70 = scmp.ne.s32.totalorder %s62, %s64
      %p71 = scmp.eq.s32.totalorder %s19, 1
      %p72 = por %p70, %p71
      %p73 = scmp.ne.s32.totalorder %s64, %s65
      %p74 = scmp.eq.s32.totalorder %s19, 0
      %p75 = por %p73, %p74
      %p76 = scmp.ne.s32.totalorder %s64, %s65
      %p77 = scmp.eq.s32.totalorder %s20, 1
      %p78 = por %p76, %p77
      %p80 = scmp.ne.s32.totalorder %s65, %s79
      %p81 = scmp.eq.s32.totalorder %s20, 0
      %p82 = por %p80, %p81
      %s84 = sadd.s32 %s83, 1
      %p87 = scmp.eq.s32.totalorder %s14, 1
      %p88 = scmp.ne.s32.totalorder %s83, %s85
      %p89 = scmp.eq.s32.totalorder %s14, 0
      %p90 = por %p88, %p89
      %p91 = scmp.ne.s32.totalorder %s83, %s85
      %p92 = scmp.eq.s32.totalorder %s19, 1
      %p93 = por %p91, %p92
      %p94 = scmp.ne.s32.totalorder %s85, %s86
      %p95 = scmp.eq.s32.totalorder %s19, 0
      %p96 = por %p94, %p95
      %p97 = scmp.ne.s32.totalorder %s85, %s86
      %p98 = scmp.eq.s32.totalorder %s20, 1
      %p99 = por %p97, %p98
      %p101 = scmp.ne.s32.totalorder %s86, %s100
      %p102 = scmp.eq.s32.totalorder %s20, 0
      %p103 = por %p101, %p102
      %s105 = sadd.s32 %s104, 1
      %p108 = scmp.eq.s32.totalorder %s14, 1
      %p109 = scmp.ne.s32.totalorder %s104, %s106
      %p110 = scmp.eq.s32.totalorder %s14, 0
      %p111 = por %p109, %p110
      %p112 = scmp.ne.s32.totalorder %s104, %s106
      %p113 = scmp.eq.s32.totalorder %s19, 1
      %p114 = por %p112, %p113
      %p115 = scmp.ne.s32.totalorder %s106, %s107
      %p116 = scmp.eq.s32.totalorder %s19, 0
      %p117 = por %p115, %p116
      %p118 = scmp.ne.s32.totalorder %s106, %s107
      %p119 = scmp.eq.s32.totalorder %s20, 1
      %p120 = por %p118, %p119
      %p122 = scmp.ne.s32.totalorder %s107, %s121
      %p123 = scmp.eq.s32.totalorder %s20, 0
      %p124 = por %p122, %p123
      %s126 = sadd.s32 %s125, 1
      %p129 = scmp.eq.s32.totalorder %s14, 1
      %p130 = scmp.ne.s32.totalorder %s125, %s127
      %p131 = scmp.eq.s32.totalorder %s14, 0
      %p132 = por %p130, %p131
      %p133 = scmp.ne.s32.totalorder %s125, %s127
      %p134 = scmp.eq.s32.totalorder %s19, 1
      %p135 = por %p133, %p134
      %p136 = scmp.ne.s32.totalorder %s127, %s128
      %p137 = scmp.eq.s32.totalorder %s19, 0
      %p138 = por %p136, %p137
      %p139 = scmp.ne.s32.totalorder %s127, %s128
      %p140 = scmp.eq.s32.totalorder %s20, 1
      %p141 = por %p139, %p140
      %p143 = scmp.ne.s32.totalorder %s128, %s142
      %p144 = scmp.eq.s32.totalorder %s20, 0
      %p145 = por %p143, %p144
      %s146 = ssub.s32 %s21, %s33
      %s147 = ssub.s32 %s22, %s29
      %s148 = sor.u32 %s146, %s147
      %p149 = scmp.eq.s32.totalorder %s148, 0
      %s151 = sadd.s32 %s150, 1
      %s152 = scalar_select %p149, %s150, %s151
      %p155 = pneg %p149
      %p156 = scmp.eq.s32.totalorder %s14, 1
      %p157 = por %p155, %p156
      %p158 = scmp.ne.s32.totalorder %s150, %s153
      %p159 = scmp.eq.s32.totalorder %s14, 0
      %p160 = por %p158, %p159
      %p161 = scmp.ne.s32.totalorder %s150, %s153
      %p162 = scmp.eq.s32.totalorder %s19, 1
      %p163 = por %p161, %p162
      %p164 = scmp.ne.s32.totalorder %s153, %s154
      %p165 = scmp.eq.s32.totalorder %s19, 0
      %p166 = por %p164, %p165
      %p167 = scmp.ne.s32.totalorder %s153, %s154
      %p168 = scmp.eq.s32.totalorder %s20, 1
      %p169 = por %p167, %p168
      %p171 = scmp.ne.s32.totalorder %s154, %s170
      %p172 = scmp.eq.s32.totalorder %s20, 0
      %p173 = por %p171, %p172
      %p174 = scmp.le.s32.totalorder 1, %s14
      %p175 = scmp.lt.s32.totalorder %s14, 3
      %p176 = pnand %p174, %p175
      %p177 = pneg %p176
      // Predicated region
      $region9: #{tpu_custom_call.1} parent=5 // pred_check
        _
      $region10: #{tpu_custom_call.1} parent=5 // pred_check_branch
        %179 = sbr.rel (%p176) target = $region12
      $region11: #{tpu_custom_call.1} parent=5 // pred_region
        %s180 = ssub.s32 %s14, 1
        // Predicated region
        $region13: #{tpu_custom_call.1} parent=11 // pred_check
          %p181 = pneg %p75
        $region14: #{tpu_custom_call.1} parent=11 // pred_check_branch
          %183 = sbr.rel (%p181) target = $region16
        $region15: #{tpu_custom_call.1} parent=11 // pred_region
          _
        $region16: #{tpu_custom_call.1} parent=11 // pred_fallthru
          _
        // Predicated region
        $region17: #{tpu_custom_call.1} parent=11 // pred_check
          %p184 = pneg %p96
        $region18: #{tpu_custom_call.1} parent=11 // pred_check_branch
          %186 = sbr.rel (%p184) target = $region20
        $region19: #{tpu_custom_call.1} parent=11 // pred_region
          _
        $region20: #{tpu_custom_call.1} parent=11 // pred_fallthru
          _
        // Predicated region
        $region21: #{tpu_custom_call.1} parent=11 // pred_check
          %p187 = pneg %p117
        $region22: #{tpu_custom_call.1} parent=11 // pred_check_branch
          %189 = sbr.rel (%p187) target = $region24
        $region23: #{tpu_custom_call.1} parent=11 // pred_region
          _
        $region24: #{tpu_custom_call.1} parent=11 // pred_fallthru
          _
        // Predicated region
        $region25: #{tpu_custom_call.1} parent=11 // pred_check
          %p190 = pneg %p138
        $region26: #{tpu_custom_call.1} parent=11 // pred_check_branch
          %192 = sbr.rel (%p190) target = $region28
        $region27: #{tpu_custom_call.1} parent=11 // pred_region
          _
        $region28: #{tpu_custom_call.1} parent=11 // pred_fallthru
          _
      $region12: #{tpu_custom_call.1} parent=5 // pred_fallthru
        _
      %p193 = scmp.lt.s32.totalorder %s14, 2
      // Predicated region
      $region29: #{tpu_custom_call.1} parent=5 // pred_check
        %p194 = pneg %p193
      $region30: #{tpu_custom_call.1} parent=5 // pred_check_branch
        %196 = sbr.rel (%p194) target = $region32
      $region31: #{tpu_custom_call.1} parent=5 // pred_region
        // Predicated region
        $region33: #{tpu_custom_call.1} parent=31 // pred_check
          %p197 = pneg %p48
        $region34: #{tpu_custom_call.1} parent=31 // pred_check_branch
          %199 = sbr.rel (%p197) target = $region36
        $region35: #{tpu_custom_call.1} parent=31 // pred_region
          %s200 = smul.u32 2, %s22
          %p201 = scmp.lt.s32.totalorder %s21, 1
          %s202 = scalar_select %p201, %s21, 1
          %p203 = scmp.lt.s32.totalorder %s200, 1
          %s204 = scalar_select %p203, %s200, 1
          %s205 = smul.addr %s202, 2
          %s206 = sadd.s32 %s204, %s205
          %s207 = scalar_lea.vmem %s0, %s206
          %s208 = smul.u32 2, %s22
        $region36: #{tpu_custom_call.1} parent=31 // pred_fallthru
          _
      $region32: #{tpu_custom_call.1} parent=5 // pred_fallthru
        _
      %p209 = scmp.le.s32.totalorder 1, %s14
      %p210 = scmp.lt.s32.totalorder %s14, 3
      %p211 = pnand %p209, %p210
      %p212 = pneg %p211
      // Predicated region
      $region37: #{tpu_custom_call.1} parent=5 // pred_check
        _
      $region38: #{tpu_custom_call.1} parent=5 // pred_check_branch
        %214 = sbr.rel (%p211) target = $region40
      $region39: #{tpu_custom_call.1} parent=5 // pred_region
        %s215 = ssub.s32 %s14, 1
        %s216 = smul.u32 2, %s24
        %p217 = scmp.lt.s32.totalorder %s23, 1
        %s218 = scalar_select %p217, %s23, 1
        %p219 = scmp.lt.s32.totalorder %s216, 1
        %s220 = scalar_select %p219, %s216, 1
        %s221 = smul.addr %s218, 2
        %s222 = sadd.s32 %s220, %s221
        %s223 = scalar_lea.vmem %s0, %s222
        %p224 = pneg %p54
        %p225 = pneg %p51
        %p226 = pneg %p75
        %p227 = pneg %p72
        %p228 = pneg %p96
        %p229 = pneg %p93
        %p230 = pneg %p117
        %p231 = pneg %p114
        %p232 = pneg %p138
        %p233 = pneg %p135
        %p234 = pneg %p166
        %p235 = pneg %p163
        %s236 = sand.u32 %s153, 1
        %s237 = scalar_lea.sflag [#allocation3], %s236
        %s238 = sand.u32 %s153, 1
        %s239 = smul.addr %s238, 16
        %s240 = scalar_lea.vmem [#allocation2], %s239
        %s241 = smul.u32 2, %s24
        %p242 = scmp.lt.s32.totalorder %s23, 1
        %s243 = scalar_select %p242, %s23, 1
        %p244 = scmp.lt.s32.totalorder %s241, 1
        %s245 = scalar_select %p244, %s241, 1
        %s246 = smul.addr %s243, 2
        %s247 = sadd.s32 %s245, %s246
        %s248 = scalar_lea.vmem %s0, %s247
        %s249 = smul.u32 2, %s24
        %s250 = smul.u32 2, %s24
        %v251 = vld [vmem:[%s1] sm:$0xff]
        %v252 = vld [vmem:[%s1 + $0x8] sm:$0xff]
        %v253 = vld [vmem:[%s1 + $0x10] sm:$0xff]
        %v254 = vld [vmem:[%s1 + $0x18] sm:$0xff]
        %v255 = vld [vmem:[%s1 + $0x20] sm:$0xff]
        %v256 = vld [vmem:[%s1 + $0x28] sm:$0xff]
        %v257 = vld [vmem:[%s1 + $0x30] sm:$0xff]
        %v258 = vld [vmem:[%s1 + $0x38] sm:$0xff]
        %v259 = vld [vmem:[%s2] sm:$0xff]
        %v260 = vld [vmem:[%s2 + $0x8] sm:$0xff]
        %v261 = vld [vmem:[%s2 + $0x10] sm:$0xff]
        %v262 = vld [vmem:[%s2 + $0x18] sm:$0xff]
        %v263 = vld [vmem:[%s2 + $0x20] sm:$0xff]
        %v264 = vld [vmem:[%s2 + $0x28] sm:$0xff]
        %v265 = vld [vmem:[%s2 + $0x30] sm:$0xff]
        %v266 = vld [vmem:[%s2 + $0x38] sm:$0xff]
        %v267 = vld [vmem:[%s3] sm:$0xff]
        %v268 = vld [vmem:[%s4] sm:$0xff]
        %v269 = vld [vmem:[%s248] sm:$0x3]
        %271 = vset.pattern.permute.xlu0 0
        %272 = vperm.xlu0 %271, %v251
        %v273 = vpop.permute.xlu0 %272
        %276 = vset.pattern.permute.xlu0 0
        %277 = vperm.xlu0 %276, %v252
        %v278 = vpop.permute.xlu0 %277
        %281 = vset.pattern.permute.xlu0 0
        %282 = vperm.xlu0 %281, %v253
        %v283 = vpop.permute.xlu0 %282
        %286 = vset.pattern.permute.xlu0 0
        %287 = vperm.xlu0 %286, %v254
        %v288 = vpop.permute.xlu0 %287
        %291 = vset.pattern.permute.xlu0 0
        %292 = vperm.xlu0 %291, %v255
        %v293 = vpop.permute.xlu0 %292
        %296 = vset.pattern.permute.xlu0 0
        %297 = vperm.xlu0 %296, %v256
        %v298 = vpop.permute.xlu0 %297
        %301 = vset.pattern.permute.xlu0 0
        %302 = vperm.xlu0 %301, %v257
        %v303 = vpop.permute.xlu0 %302
        %306 = vset.pattern.permute.xlu0 0
        %307 = vperm.xlu0 %306, %v258
        %v308 = vpop.permute.xlu0 %307
        %v311 = vlaneseq
        %v312 = vshrl.u32 %v311, 7
        %v313 = vsub.s32 0, %v312
        %v314 = vrot.slane %v269, %v313
        %v315 = vlaneseq
        %v316 = vshrl.u32 %v315, 7
        %v317 = vsub.s32 1, %v316
        %v318 = vrot.slane %v269, %v317
        %v321 = vmul.f32 %v273, %v314
        %v322 = vmul.f32 %v273, %v318
        %v323 = vmul.f32 %v278, %v314
        %v324 = vmul.f32 %v278, %v318
        %v325 = vmul.f32 %v283, %v314
        %v326 = vmul.f32 %v283, %v318
        %v327 = vmul.f32 %v288, %v314
        %v328 = vmul.f32 %v288, %v318
        %v329 = vmul.f32 %v293, %v314
        %v330 = vmul.f32 %v293, %v318
        %v331 = vmul.f32 %v298, %v314
        %v332 = vmul.f32 %v298, %v318
        %v333 = vmul.f32 %v303, %v314
        %v334 = vmul.f32 %v303, %v318
        %v335 = vmul.f32 %v308, %v314
        %v336 = vmul.f32 %v308, %v318
        %338 = vset.pattern.permute.xlu0 0
        %339 = vperm.xlu0 %338, %v259
        %v340 = vpop.permute.xlu0 %339
        %343 = vset.pattern.permute.xlu0 0
        %344 = vperm.xlu0 %343, %v260
        %v345 = vpop.permute.xlu0 %344
        %348 = vset.pattern.permute.xlu0 0
        %349 = vperm.xlu0 %348, %v261
        %v350 = vpop.permute.xlu0 %349
        %353 = vset.pattern.permute.xlu0 0
        %354 = vperm.xlu0 %353, %v262
        %v355 = vpop.permute.xlu0 %354
        %358 = vset.pattern.permute.xlu0 0
        %359 = vperm.xlu0 %358, %v263
        %v360 = vpop.permute.xlu0 %359
        %363 = vset.pattern.permute.xlu0 0
        %364 = vperm.xlu0 %363, %v264
        %v365 = vpop.permute.xlu0 %364
        %368 = vset.pattern.permute.xlu0 0
        %369 = vperm.xlu0 %368, %v265
        %v370 = vpop.permute.xlu0 %369
        %373 = vset.pattern.permute.xlu0 0
        %374 = vperm.xlu0 %373, %v266
        %v375 = vpop.permute.xlu0 %374
        %v377 = vadd.f32 %v321, %v340
        %v378 = vadd.f32 %v322, %v340
        %v379 = vadd.f32 %v323, %v345
        %v380 = vadd.f32 %v324, %v345
        %v381 = vadd.f32 %v325, %v350
        %v382 = vadd.f32 %v326, %v350
        %v383 = vadd.f32 %v327, %v355
        %v384 = vadd.f32 %v328, %v355
        %v385 = vadd.f32 %v329, %v360
        %v386 = vadd.f32 %v330, %v360
        %v387 = vadd.f32 %v331, %v365
        %v388 = vadd.f32 %v332, %v365
        %v389 = vadd.f32 %v333, %v370
        %v390 = vadd.f32 %v334, %v370
        %v391 = vadd.f32 %v335, %v375
        %v392 = vadd.f32 %v336, %v375
        %v393 = vmul.f32 %v377, 0.5
        %v394 = vmul.f32 %v378, 0.5
        %v395 = vmul.f32 %v379, 0.5
        %v396 = vmul.f32 %v380, 0.5
        %v397 = vmul.f32 %v381, 0.5
        %v398 = vmul.f32 %v382, 0.5
        %v399 = vmul.f32 %v383, 0.5
        %v400 = vmul.f32 %v384, 0.5
        %v401 = vmul.f32 %v385, 0.5
        %v402 = vmul.f32 %v386, 0.5
        %v403 = vmul.f32 %v387, 0.5
        %v404 = vmul.f32 %v388, 0.5
        %v405 = vmul.f32 %v389, 0.5
        %v406 = vmul.f32 %v390, 0.5
        %v407 = vmul.f32 %v391, 0.5
        %v408 = vmul.f32 %v392, 0.5
        %v409 = vtanh.pop %v393
        %v410 = vtanh.pop %v394
        %v411 = vtanh.pop %v395
        %v412 = vtanh.pop %v396
        %v413 = vtanh.pop %v397
        %v414 = vtanh.pop %v398
        %v415 = vtanh.pop %v399
        %v416 = vtanh.pop %v400
        %v417 = vtanh.pop %v401
        %v418 = vtanh.pop %v402
        %v419 = vtanh.pop %v403
        %v420 = vtanh.pop %v404
        %v421 = vtanh.pop %v405
        %v422 = vtanh.pop %v406
        %v423 = vtanh.pop %v407
        %v424 = vtanh.pop %v408
        %v425 = vmul.f32 %v409, 0.5
        %v426 = vmul.f32 %v410, 0.5
        %v427 = vmul.f32 %v411, 0.5
        %v428 = vmul.f32 %v412, 0.5
        %v429 = vmul.f32 %v413, 0.5
        %v430 = vmul.f32 %v414, 0.5
        %v431 = vmul.f32 %v415, 0.5
        %v432 = vmul.f32 %v416, 0.5
        %v433 = vmul.f32 %v417, 0.5
        %v434 = vmul.f32 %v418, 0.5
        %v435 = vmul.f32 %v419, 0.5
        %v436 = vmul.f32 %v420, 0.5
        %v437 = vmul.f32 %v421, 0.5
        %v438 = vmul.f32 %v422, 0.5
        %v439 = vmul.f32 %v423, 0.5
        %v440 = vmul.f32 %v424, 0.5
        %v441 = vadd.f32 %v425, 0.5
        %v442 = vadd.f32 %v426, 0.5
        %v443 = vadd.f32 %v427, 0.5
        %v444 = vadd.f32 %v428, 0.5
        %v445 = vadd.f32 %v429, 0.5
        %v446 = vadd.f32 %v430, 0.5
        %v447 = vadd.f32 %v431, 0.5
        %v448 = vadd.f32 %v432, 0.5
        %v449 = vadd.f32 %v433, 0.5
        %v450 = vadd.f32 %v434, 0.5
        %v451 = vadd.f32 %v435, 0.5
        %v452 = vadd.f32 %v436, 0.5
        %v453 = vadd.f32 %v437, 0.5
        %v454 = vadd.f32 %v438, 0.5
        %v455 = vadd.f32 %v439, 0.5
        %v456 = vadd.f32 %v440, 0.5
        %458 = vset.pattern.permute.xlu0 0
        %459 = vperm.xlu0 %458, %v268
        %v460 = vpop.permute.xlu0 %459
        %vm462 = vcmask 523264
        %v464 = vsel %vm462, %v267, 0
        %466 = vmatprep.subr.mxu0 %v442
        %467 = vmatpush1.msra.mxu0 %v441
        %468 = vmatprep.subr.mxu0 %v444
        %469 = vmatpush1.msra.mxu0 %v443
        %470 = vmatprep.subr.mxu0 %v446
        %471 = vmatpush1.msra.mxu0 %v445
        %472 = vmatprep.subr.mxu0 %v448
        %473 = vmatpush1.msra.mxu0 %v447
        %474 = vmatprep.subr.mxu0 %v450
        %475 = vmatpush1.msra.mxu0 %v449
        %476 = vmatprep.subr.mxu0 %v452
        %477 = vmatpush1.msra.mxu0 %v451
        %478 = vmatprep.subr.mxu0 %v454
        %479 = vmatpush1.msra.mxu0 %v453
        %480 = vmatprep.subr.mxu0 %v456
        %481 = vmatpush1.msra.mxu0 %v455
        %482 = vmatprep.subr.mxu0 0.0
        %483 = vmatpush1.msra.mxu0 0.0
        %484 = vmatprep.subr.mxu0 0.0
        %485 = vmatpush1.msra.mxu0 0.0
        %486 = vmatprep.subr.mxu0 0.0
        %487 = vmatpush1.msra.mxu0 0.0
        %488 = vmatprep.subr.mxu0 0.0
        %489 = vmatpush1.msra.mxu0 0.0
        %490 = vmatprep.subr.mxu0 0.0
        %491 = vmatpush1.msra.mxu0 0.0
        %492 = vmatprep.subr.mxu0 0.0
        %493 = vmatpush1.msra.mxu0 0.0
        %494 = vmatprep.subr.mxu0 0.0
        %495 = vmatpush1.msra.mxu0 0.0
        %496 = vmatprep.subr.mxu0 0.0
        %497 = vmatpush1.msra.mxu0 0.0
        %498 = vmatprep.subr.mxu0 0.0
        %499 = vmatpush1.msra.mxu0 0.0
        %500 = vmatprep.subr.mxu0 0.0
        %501 = vmatpush1.msra.mxu0 0.0
        %502 = vmatprep.subr.mxu0 0.0
        %503 = vmatpush1.msra.mxu0 0.0
        %504 = vmatprep.subr.mxu0 0.0
        %505 = vmatpush1.msra.mxu0 0.0
        %506 = vmatprep.subr.mxu0 0.0
        %507 = vmatpush1.msra.mxu0 0.0
        %508 = vmatprep.subr.mxu0 0.0
        %509 = vmatpush1.msra.mxu0 0.0
        %510 = vmatprep.subr.mxu0 0.0
        %511 = vmatpush1.msra.mxu0 0.0
        %512 = vmatprep.subr.mxu0 0.0
        %513 = vmatpush1.msra.mxu0 0.0
        %514 = vmatprep.subr.mxu0 0.0
        %515 = vmatpush1.msra.mxu0 0.0
        %516 = vmatprep.subr.mxu0 0.0
        %517 = vmatpush1.msra.mxu0 0.0
        %518 = vmatprep.subr.mxu0 0.0
        %519 = vmatpush1.msra.mxu0 0.0
        %520 = vmatprep.subr.mxu0 0.0
        %521 = vmatpush1.msra.mxu0 0.0
        %522 = vmatprep.subr.mxu0 0.0
        %523 = vmatpush1.msra.mxu0 0.0
        %524 = vmatprep.subr.mxu0 0.0
        %525 = vmatpush1.msra.mxu0 0.0
        %526 = vmatprep.subr.mxu0 0.0
        %527 = vmatpush1.msra.mxu0 0.0
        %528 = vmatprep.subr.mxu0 0.0
        %529 = vmatpush1.msra.mxu0 0.0
        %530 = vmatprep.mubr.f32.mxu0 0.0
        %531 = vmatmul.mubr.f32.gmra.mrb[0].mxu0 %v464
        %v532 = vpop.f32.mrb[0].mxu0
        %v533 = vadd.f32 %v460, %v532
        %v534 = vpop.f32.mrb[0].mxu0
        %v535 = vadd.f32 %v460, %v534
        %536 = vdwg.mxu0
        %vm537 = vcmp.gt.f32.partialorder %v533, 20.0
        %vm538 = vcmp.gt.f32.partialorder %v535, 20.0
        %v539 = vmin.f32 %v533, 20.0
        %v540 = vmin.f32 %v535, 20.0
        %v541 = vmul.f32 %v539, 1.442695
        %v542 = vpow.pop %v541
        %v543 = vmul.f32 %v540, 1.442695
        %v544 = vpow.pop %v543
        %v545 = vadd.f32 %v542, 1.0
        %v546 = vlog2.pop %v545
        %v547 = vmul.f32 %v546, 0.6931472
        %v548 = vmul.f32 -0.5, %v542
        %v549 = vadd.f32 %v548, 1.0
        %v550 = vmul.f32 %v549, %v542
        %v551 = vand.u32 2147483647, %v542
        %vm552 = vcmp.lt.f32.partialorder %v551, 0.0004427343
        %v553 = vsel %vm552, %v550, %v547
        %v554 = vadd.f32 %v544, 1.0
        %v555 = vlog2.pop %v554
        %v556 = vmul.f32 %v555, 0.6931472
        %v557 = vmul.f32 -0.5, %v544
        %v558 = vadd.f32 %v557, 1.0
        %v559 = vmul.f32 %v558, %v544
        %v560 = vand.u32 2147483647, %v544
        %vm561 = vcmp.lt.f32.partialorder %v560, 0.0004427343
        %v562 = vsel %vm561, %v559, %v556
        %v563 = vsel %vm537, %v533, %v553
        %v564 = vsel %vm538, %v535, %v562
        %v565 = vadd.f32 %v563, 1e-06
        %v566 = vadd.f32 %v564, 1e-06
        %567 = vst [vmem:[%s240] sm:$0xff] %v565
        %568 = vst [vmem:[%s240 + $0x8] sm:$0xff] %v566
        %s569 = sand.u32 %s153, 1
        %s570 = scalar_lea.sflag [#allocation3], %s569
        %s571 = sand.u32 %s153, 1
        %s572 = smul.addr %s571, 16
        %s573 = scalar_lea.vmem [#allocation2], %s572
        // Predicated region
        $region41: #{tpu_custom_call.1} parent=39 // pred_check
          %p574 = pneg %p163
        $region42: #{tpu_custom_call.1} parent=39 // pred_check_branch
          %576 = sbr.rel (%p574) target = $region44
        $region43: #{tpu_custom_call.1} parent=39 // pred_region
          %s577 = smul.u32 2, %s24
          %s579 = ssub.s32 256, 256
          %580 = vsyncadd %s570, %s579
          %s581 = smul.addr %s23, 2
          %s582 = sadd.s32 %s577, %s581
          %s583 = smul.addr %s582, 128
          %s584 = scalar_lea.hbm %s5, %s583
          %s586 = sshll.u32 %s573, 4
          %s587 = int_to_ptr.vmem [resolvable:$true] %s586
          %589 = dma.vmem_to_hbm [thread:$0]  %s587, 256, %s584, %s570
        $region44: #{tpu_custom_call.1} parent=39 // pred_fallthru
          _
      $region40: #{tpu_custom_call.1} parent=5 // pred_fallthru
        _
      %p590 = scmp.le.s32.totalorder 2, %s14
      // Predicated region
      $region45: #{tpu_custom_call.1} parent=5 // pred_check
        %p591 = pneg %p590
      $region46: #{tpu_custom_call.1} parent=5 // pred_check_branch
        %593 = sbr.rel (%p591) target = $region48
      $region47: #{tpu_custom_call.1} parent=5 // pred_region
        %s594 = ssub.s32 %s14, 2
        // Predicated region
        $region49: #{tpu_custom_call.1} parent=47 // pred_check
          %p595 = pneg %p169
        $region50: #{tpu_custom_call.1} parent=47 // pred_check_branch
          %597 = sbr.rel (%p595) target = $region52
        $region51: #{tpu_custom_call.1} parent=47 // pred_region
          %s598 = sand.u32 %s154, 1
          %s599 = scalar_lea.sflag [#allocation3], %s598
          %s600 = sand.u32 %s154, 1
          %s601 = smul.addr %s600, 16
          %s602 = scalar_lea.vmem [#allocation2], %s601
          %603 = dma.done %s599, 256
        $region52: #{tpu_custom_call.1} parent=47 // pred_fallthru
          _
      $region48: #{tpu_custom_call.1} parent=5 // pred_fallthru
        _
    $region6: #{tpu_custom_call.1} parent=1 // loop_footer
      %s18 = sadd.s32 1, %s14
    $region7: #{tpu_custom_call.1} parent=1 // loop_footer_branch
      %13 = sbr.rel target = $region3
    $region8: #{tpu_custom_call.1} parent=1 // loop_exit
      _
    %604 = vsyncpa [#allocation3], 1
    %s605 = scalar_lea.sflag [#allocation3], 1
    %606 = vsyncpa %s605, 1

</llo_original>
